<compile_context>
chip_gen: v7x
topology: tpu7x:2x2x1
jax: 0.10.0
libtpu: 0.0.40
codegen_flags: <defaults>
</compile_context>

<pallas_src>
import jax
import jax.numpy as jnp
from jax.experimental import pallas as pl
from jax.experimental.pallas import tpu as pltpu


def patch_embed_kernel(x_ref, w_ref, b_ref, o_ref):
    # x_ref: (1, K, N)  raw time-slab of x,   K = r*patch_size
    # w_ref: (K, D)     block-diagonal weight (resident), D = r*embed_dim
    # b_ref: (1, D)     tiled bias (resident)
    # o_ref: (1, N, D)  packed output block
    x = x_ref[0]                                            # (K, N)
    # out[n, j] = sum_k x[k, n] * w[k, j]
    acc = jnp.dot(x.T, w_ref[...], preferred_element_type=jnp.float32)  # (N, D) f32
    o_ref[0] = (acc + b_ref[...].astype(jnp.float32)).astype(o_ref.dtype)


def _patches_per_step(P, patch_size, embed_dim, N, itemsize):
    """Pick r = number of patches embedded per grid step.

    Constraints: r | P; lane-dense output (r*embed_dim % 128 == 0); sublane
    alignment of the input slab (r*patch_size % 8 == 0); K = r*patch_size <= 128
    (fills one MXU pass, keeps the zero-padded block-diagonal weight small);
    VMEM budget sized conservatively for v7x's 32 MiB scoped default
    (double-buffered in/out tiles + resident weight).
    """
    budget = 8 * 1024 * 1024
    best = None
    for r in range(1, P + 1):
        if P % r:
            continue
        if (r * embed_dim) % 128 or (r * patch_size) % 8:
            continue
        if r * patch_size > 128:
            continue
        tile_bytes = itemsize * (2 * (r * patch_size * N + N * r * embed_dim)
                                 + r * patch_size * r * embed_dim)
        if tile_bytes > budget:
            continue
        best = r
    # Fallback: full extent over P (block == full array dims, always legal).
    return best if best is not None else P


def patch_embedding(x, weight, bias, patch_size, embed_dim):
    """x: [B, T, N] time-major input (the module's pre-transpose layout)."""
    B, T, N = x.shape
    assert T % patch_size == 0, "time length must be a multiple of patch_size"
    P = T // patch_size

    if not embed_dim:
        # No Linear; norm_layer defaults to Identity -> pure layout op.
        return jnp.transpose(x, (0, 2, 1)).reshape(B, N, P, patch_size)

    itemsize = jnp.dtype(x.dtype).itemsize
    r = _patches_per_step(P, patch_size, embed_dim, N, itemsize)
    K = r * patch_size
    D = r * embed_dim

    # Block-diagonal weight: r copies of (patch_size, embed_dim) on the diagonal,
    # so one (K, D) matmul embeds r consecutive patches at once.  The extra
    # zero-FLOPs are free on the MXU for a memory-bound op.
    w = weight.T.astype(x.dtype)                       # torch Linear stores (out,in)
    w_bd = jnp.kron(jnp.eye(r, dtype=w.dtype), w)      # (K, D)
    b_bd = jnp.tile(bias.astype(jnp.float32), r).reshape(1, D)

    grid = (B, P // r)
    out_bytes = B * N * P * embed_dim * itemsize
    cost = pl.CostEstimate(
        flops=2 * B * N * P * patch_size * embed_dim,
        transcendentals=0,
        bytes_accessed=B * T * N * itemsize + out_bytes + w_bd.size * itemsize,
    )

    out_packed = pl.pallas_call(
        patch_embed_kernel,
        out_shape=jax.ShapeDtypeStruct((B, N, P * embed_dim), x.dtype),
        grid_spec=pltpu.PrefetchScalarGridSpec(
            num_scalar_prefetch=0,
            grid=grid,
            in_specs=[
                pl.BlockSpec((1, K, N), lambda b, pr: (b, pr, 0)),   # raw x slab
                pl.BlockSpec((K, D), lambda b, pr: (0, 0)),          # resident weight
                pl.BlockSpec((1, D), lambda b, pr: (0, 0)),          # resident bias
            ],
            out_specs=pl.BlockSpec((1, N, D), lambda b, pr: (b, 0, pr)),
        ),
        compiler_params=pltpu.CompilerParams(
            dimension_semantics=("parallel", "parallel"),
        ),
        cost_estimate=cost,
    )(x, w_bd, b_bd)

    # [B, N, P*embed_dim] -> [B, N, P, embed_dim] is a free contiguous reshape.
    return out_packed.reshape(B, N, P, embed_dim)


if __name__ == "__main__":
    # Small, deterministic shapes consistent with the module.
    B, N = 2, 8                 # batch, number of features (nodes)
    patch_size = 8
    embed_dim = 32
    P = 32                      # number of patches -> grid exercises both axes
    T = P * patch_size          # 256

    key = jax.random.PRNGKey(0)
    kx, kw, kb = jax.random.split(key, 3)

    x = jax.random.normal(kx, (B, T, N), dtype=jnp.float32)
    # nn.Linear(patch_size, embed_dim): weight (embed_dim, patch_size), bias (embed_dim,)
    bound = 1.0 / (patch_size ** 0.5)
    weight = jax.random.uniform(kw, (embed_dim, patch_size), jnp.float32, -bound, bound)
    bias = jax.random.uniform(kb, (embed_dim,), jnp.float32, -bound, bound)

    out = patch_embedding(x, weight, bias, patch_size, embed_dim)
    out = jax.block_until_ready(out)

    # Pure-JAX reference of the PyTorch forward.
    ref_patches = jnp.transpose(x, (0, 2, 1)).reshape(B, N, P, patch_size)
    ref = jnp.einsum("bnpk,dk->bnpd", ref_patches, weight) + bias

    assert out.shape == (B, N, P, embed_dim)
    assert jnp.allclose(out, ref, atol=1e-5, rtol=1e-5)
    print("KERNEL_OK")
</pallas_src>

<mosaic_0001>
module attributes {stable_mosaic.version = 11 : i64} {
  func.func @patch_embed_kernel(%arg0: i32, %arg1: i32, %arg2: memref<1x128x8xf32, #tpu.memory_space<vmem>>, %arg3: memref<128x512xf32, #tpu.memory_space<vmem>>, %arg4: memref<1x512xf32, #tpu.memory_space<vmem>>, %arg5: memref<1x8x512xf32, #tpu.memory_space<vmem>>) attributes {dimension_semantics = [#tpu.dimension_semantics<parallel>, #tpu.dimension_semantics<parallel>], iteration_bounds = array<i64: 2, 2>, scalar_prefetch = 0 : i64, scratch_operands = 0 : i64, tpu.core_type = #tpu.core_type<tc>, window_params = [{transform_indices = @transform_0, window_bounds = array<i64: 1, 128, 8>}, {pipeline_mode = #tpu.pipeline_mode<synchronous>, transform_indices = @transform_1, window_bounds = array<i64: 128, 512>}, {pipeline_mode = #tpu.pipeline_mode<synchronous>, transform_indices = @transform_2, window_bounds = array<i64: 1, 512>}, {transform_indices = @transform_3, window_bounds = array<i64: 1, 8, 512>}]} {
    %c0 = arith.constant 0 : index
    %c0_0 = arith.constant 0 : index
    %c0_1 = arith.constant 0 : index
    %0 = vector.load %arg2[%c0, %c0_0, %c0_1] : memref<1x128x8xf32, #tpu.memory_space<vmem>>, vector<1x128x8xf32>
    %1 = vector.shape_cast %0 : vector<1x128x8xf32> to vector<128x8xf32>
    %2 = tpu.transpose %1, [1, 0] : vector<128x8xf32> -> vector<8x128xf32>
    %c0_2 = arith.constant 0 : index
    %c0_3 = arith.constant 0 : index
    %3 = vector.load %arg3[%c0_2, %c0_3] : memref<128x512xf32, #tpu.memory_space<vmem>>, vector<128x512xf32>
    %cst = arith.constant dense<0.000000e+00> : vector<8x512xf32>
    %4 = tpu.matmul %2, %3, %cst {dimension_numbers = #tpu.dot_dimension_numbers<[1], [0], [0], [1], [0, 0, 1, 1], [], []>} : vector<8x128xf32>, vector<128x512xf32>, vector<8x512xf32> -> vector<8x512xf32>
    %c0_4 = arith.constant 0 : index
    %c0_5 = arith.constant 0 : index
    %5 = vector.load %arg4[%c0_4, %c0_5] : memref<1x512xf32, #tpu.memory_space<vmem>>, vector<1x512xf32>
    %6 = vector.broadcast %5 : vector<1x512xf32> to vector<8x512xf32>
    %7 = arith.addf %4, %6 : vector<8x512xf32>
    %c0_6 = arith.constant 0 : index
    %c0_7 = arith.constant 0 : index
    %c0_8 = arith.constant 0 : index
    %8 = vector.load %arg5[%c0_6, %c0_7, %c0_8] : memref<1x8x512xf32, #tpu.memory_space<vmem>>, vector<1x8x512xf32>
    %9 = vector.shape_cast %8 : vector<1x8x512xf32> to vector<8x512xf32>
    %10 = vector.shape_cast %7 : vector<8x512xf32> to vector<1x8x512xf32>
    tpu.vector_store %arg5[%c0_6, %c0_7, %c0_8], %10 {strides = array<i32>} : memref<1x8x512xf32, #tpu.memory_space<vmem>>, vector<1x8x512xf32>,
    return
  }
  func.func @transform_0(%arg0: i32, %arg1: i32) -> (i32, i32, i32) {
    %c0_i32 = arith.constant 0 : i32
    %c0_i32_0 = arith.constant 0 : i32
    return %arg0, %arg1, %c0_i32 : i32, i32, i32
  }
  func.func @transform_1(%arg0: i32, %arg1: i32) -> (i32, i32) {
    %c0_i32 = arith.constant 0 : i32
    %c0_i32_0 = arith.constant 0 : i32
    %c0_i32_1 = arith.constant 0 : i32
    return %c0_i32, %c0_i32_0 : i32, i32
  }
  func.func @transform_2(%arg0: i32, %arg1: i32) -> (i32, i32) {
    %c0_i32 = arith.constant 0 : i32
    %c0_i32_0 = arith.constant 0 : i32
    %c0_i32_1 = arith.constant 0 : i32
    return %c0_i32, %c0_i32_0 : i32, i32
  }
  func.func @transform_3(%arg0: i32, %arg1: i32) -> (i32, i32, i32) {
    %c0_i32 = arith.constant 0 : i32
    %c0_i32_0 = arith.constant 0 : i32
    return %arg0, %c0_i32, %arg1 : i32, i32, i32
  }
}

</mosaic_0001>

<llo_original>
// kernel: tpu_custom_call.1
$region0: #{tpu_custom_call.1}
  #allocation0 [shape = 'u32[]', space=smem, size = 0x4, offset = 0x4, fixed_abs, tag = 'smem constant byte address 0x4 - core index']
  #allocation1 [shape = 'u32[144,128]{1,0:T(1,128)}', space=vmem, size = 0x12000, scoped, tag = 'internal scratch']
  %s0 = inlined_call_operand.vmem [shape: f32[2,256,8], index: 0, kind: input, shape index: {}]
  %s1 = inlined_call_operand.vmem [shape: f32[128,512], index: 1, kind: input, shape index: {}]
  %s2 = inlined_call_operand.vmem [shape: f32[1,512], index: 2, kind: input, shape index: {}]
  %s3 = inlined_call_operand.hbm [shape: f32[2,8,1024], index: 3, kind: output, shape index: {}]
  %s4 = sld [smem:[#allocation0]]
  $region45: #{tpu_custom_call.1} parent=0
    _
  %s6 = ssub.s32 1, %s4
  %s7 = scalar_select 0, %s6, %s4
  $region1: #{tpu_custom_call.1} parent=0
    #allocation2 [shape = 'u8[32768]{0}', space=vmem, size = 0x8000, scoped, tag = 'output window, operand 0']
    #allocation3 [shape = 's32[2]{0}', space=sflag, size = 0x8, scoped, tag = 'scoped memory for tpu_custom_call.1']
    %8 = vsyncpa [#allocation3], 0
    %s9 = scalar_lea.sflag [#allocation3], 1
    %10 = vsyncpa %s9, 0
    loop: start=0, step=1, limit=6
    $region2: #{tpu_custom_call.1} parent=1 // loop_pre_header
      _
    $region3: #{tpu_custom_call.1} parent=1 // loop_header
      %s12 = sphi 0, %s16
      %p13 = scmp.ge.s32.totalorder %s12, 6
      %s19 = sphi 0, %s31
      %s20 = sphi 0, %s27
      %s21 = sphi 0, %s19
      %s22 = sphi 0, %s20
      %s23 = sphi 0, %s21
      %s24 = sphi 0, %s22
      %s36 = sphi 0, %s38
      %s39 = sphi 0, %s36
      %s40 = sphi 0, %s39
      %s56 = sphi 0, %s40
      %s60 = sphi 0, %s60
      %s62 = sphi 0, %s60
      %s63 = sphi 0, %s62
      %s77 = sphi 0, %s63
      %s81 = sphi 0, %s81
      %s83 = sphi 0, %s81
      %s84 = sphi 0, %s83
      %s98 = sphi 0, %s84
      %s106 = sphi 0, %s108
      %s109 = sphi 0, %s106
      %s110 = sphi 0, %s109
      %s126 = sphi 0, %s110
    $region4: #{tpu_custom_call.1} parent=1 // loop_header_branch
      %15 = sbr.rel (%p13) target = $region8
    $region5: #{tpu_custom_call.1} parent=1 // loop_body
      %s17 = ssub.s32 %s12, 1
      %s18 = ssub.s32 %s12, 2
      %s25 = sadd.s32 1, %s20
      %p26 = scmp.ge.s32.totalorder %s25, 2
      %s27 = scalar_select %p26, 0, %s25
      %s28 = sadd.s32 1, %s19
      %s29 = scalar_select %p26, %s28, %s19
      %p30 = scmp.ge.s32.totalorder %s29, 2
      %s31 = scalar_select %p30, 0, %s29
      %s32 = ssub.s32 %s19, %s31
      %s33 = ssub.s32 %s20, %s27
      %s34 = sor.u32 %s32, %s33
      %p35 = scmp.eq.s32.totalorder %s34, 0
      %s37 = sadd.s32 %s36, 1
      %s38 = scalar_select %p35, %s36, %s37
      %p41 = pneg %p35
      %p42 = scmp.eq.s32.totalorder %s12, 3
      %p43 = por %p41, %p42
      %p44 = scmp.ne.s32.totalorder %s36, %s39
      %p45 = scmp.eq.s32.totalorder %s12, 0
      %p46 = por %p44, %p45
      %p47 = scmp.ne.s32.totalorder %s36, %s39
      %p48 = scmp.eq.s32.totalorder %s17, 3
      %p49 = por %p47, %p48
      %p50 = scmp.ne.s32.totalorder %s39, %s40
      %p51 = scmp.eq.s32.totalorder %s17, 0
      %p52 = por %p50, %p51
      %p53 = scmp.ne.s32.totalorder %s39, %s40
      %p54 = scmp.eq.s32.totalorder %s18, 3
      %p55 = por %p53, %p54
      %p57 = scmp.ne.s32.totalorder %s40, %s56
      %p58 = scmp.eq.s32.totalorder %s18, 0
      %p59 = por %p57, %p58
      %s61 = sadd.s32 %s60, 1
      %p64 = scmp.eq.s32.totalorder %s12, 3
      %p65 = scmp.ne.s32.totalorder %s60, %s62
      %p66 = scmp.eq.s32.totalorder %s12, 0
      %p67 = por %p65, %p66
      %p68 = scmp.ne.s32.totalorder %s60, %s62
      %p69 = scmp.eq.s32.totalorder %s17, 3
      %p70 = por %p68, %p69
      %p71 = scmp.ne.s32.totalorder %s62, %s63
      %p72 = scmp.eq.s32.totalorder %s17, 0
      %p73 = por %p71, %p72
      %p74 = scmp.ne.s32.totalorder %s62, %s63
      %p75 = scmp.eq.s32.totalorder %s18, 3
      %p76 = por %p74, %p75
      %p78 = scmp.ne.s32.totalorder %s63, %s77
      %p79 = scmp.eq.s32.totalorder %s18, 0
      %p80 = por %p78, %p79
      %s82 = sadd.s32 %s81, 1
      %p85 = scmp.eq.s32.totalorder %s12, 3
      %p86 = scmp.ne.s32.totalorder %s81, %s83
      %p87 = scmp.eq.s32.totalorder %s12, 0
      %p88 = por %p86, %p87
      %p89 = scmp.ne.s32.totalorder %s81, %s83
      %p90 = scmp.eq.s32.totalorder %s17, 3
      %p91 = por %p89, %p90
      %p92 = scmp.ne.s32.totalorder %s83, %s84
      %p93 = scmp.eq.s32.totalorder %s17, 0
      %p94 = por %p92, %p93
      %p95 = scmp.ne.s32.totalorder %s83, %s84
      %p96 = scmp.eq.s32.totalorder %s18, 3
      %p97 = por %p95, %p96
      %p99 = scmp.ne.s32.totalorder %s84, %s98
      %p100 = scmp.eq.s32.totalorder %s18, 0
      %p101 = por %p99, %p100
      %s102 = ssub.s32 %s19, %s31
      %s103 = ssub.s32 %s20, %s27
      %s104 = sor.u32 %s102, %s103
      %p105 = scmp.eq.s32.totalorder %s104, 0
      %s107 = sadd.s32 %s106, 1
      %s108 = scalar_select %p105, %s106, %s107
      %p111 = pneg %p105
      %p112 = scmp.eq.s32.totalorder %s12, 3
      %p113 = por %p111, %p112
      %p114 = scmp.ne.s32.totalorder %s106, %s109
      %p115 = scmp.eq.s32.totalorder %s12, 0
      %p116 = por %p114, %p115
      %p117 = scmp.ne.s32.totalorder %s106, %s109
      %p118 = scmp.eq.s32.totalorder %s17, 3
      %p119 = por %p117, %p118
      %p120 = scmp.ne.s32.totalorder %s109, %s110
      %p121 = scmp.eq.s32.totalorder %s17, 0
      %p122 = por %p120, %p121
      %p123 = scmp.ne.s32.totalorder %s109, %s110
      %p124 = scmp.eq.s32.totalorder %s18, 3
      %p125 = por %p123, %p124
      %p127 = scmp.ne.s32.totalorder %s110, %s126
      %p128 = scmp.eq.s32.totalorder %s18, 0
      %p129 = por %p127, %p128
      %p130 = scmp.le.s32.totalorder 1, %s12
      %p131 = scmp.lt.s32.totalorder %s12, 5
      %p132 = pnand %p130, %p131
      %p133 = pneg %p132
      // Predicated region
      $region9: #{tpu_custom_call.1} parent=5 // pred_check
        _
      $region10: #{tpu_custom_call.1} parent=5 // pred_check_branch
        %135 = sbr.rel (%p132) target = $region12
      $region11: #{tpu_custom_call.1} parent=5 // pred_region
        %s136 = ssub.s32 %s12, 1
        // Predicated region
        $region13: #{tpu_custom_call.1} parent=11 // pred_check
          %p137 = pneg %p73
        $region14: #{tpu_custom_call.1} parent=11 // pred_check_branch
          %139 = sbr.rel (%p137) target = $region16
        $region15: #{tpu_custom_call.1} parent=11 // pred_region
          _
        $region16: #{tpu_custom_call.1} parent=11 // pred_fallthru
          _
        // Predicated region
        $region17: #{tpu_custom_call.1} parent=11 // pred_check
          %p140 = pneg %p94
        $region18: #{tpu_custom_call.1} parent=11 // pred_check_branch
          %142 = sbr.rel (%p140) target = $region20
        $region19: #{tpu_custom_call.1} parent=11 // pred_region
          _
        $region20: #{tpu_custom_call.1} parent=11 // pred_fallthru
          _
      $region12: #{tpu_custom_call.1} parent=5 // pred_fallthru
        _
      %p143 = scmp.lt.s32.totalorder %s12, 4
      // Predicated region
      $region21: #{tpu_custom_call.1} parent=5 // pred_check
        %p144 = pneg %p143
      $region22: #{tpu_custom_call.1} parent=5 // pred_check_branch
        %146 = sbr.rel (%p144) target = $region24
      $region23: #{tpu_custom_call.1} parent=5 // pred_region
        // Predicated region
        $region25: #{tpu_custom_call.1} parent=23 // pred_check
          %p147 = pneg %p46
        $region26: #{tpu_custom_call.1} parent=23 // pred_check_branch
          %149 = sbr.rel (%p147) target = $region28
        $region27: #{tpu_custom_call.1} parent=23 // pred_region
          %s150 = smul.u32 16, %s20
          %p151 = scmp.lt.s32.totalorder %s19, 1
          %s152 = scalar_select %p151, %s19, 1
          %p153 = scmp.lt.s32.totalorder %s150, 31
          %s154 = scalar_select %p153, %s150, 31
          %s155 = smul.addr %s152, 32
          %s156 = sadd.s32 %s154, %s155
          %s157 = smul.addr %s156, 8
          %s158 = scalar_lea.vmem %s0, %s157
          %s159 = smul.u32 16, %s20
        $region28: #{tpu_custom_call.1} parent=23 // pred_fallthru
          _
      $region24: #{tpu_custom_call.1} parent=5 // pred_fallthru
        _
      %p160 = scmp.le.s32.totalorder 1, %s12
      %p161 = scmp.lt.s32.totalorder %s12, 5
      %p162 = pnand %p160, %p161
      %p163 = pneg %p162
      // Predicated region
      $region29: #{tpu_custom_call.1} parent=5 // pred_check
        _
      $region30: #{tpu_custom_call.1} parent=5 // pred_check_branch
        %165 = sbr.rel (%p162) target = $region32
      $region31: #{tpu_custom_call.1} parent=5 // pred_region
        %s166 = ssub.s32 %s12, 1
        %s167 = smul.u32 16, %s22
        %p168 = scmp.lt.s32.totalorder %s21, 1
        %s169 = scalar_select %p168, %s21, 1
        %p170 = scmp.lt.s32.totalorder %s167, 31
        %s171 = scalar_select %p170, %s167, 31
        %s172 = smul.addr %s169, 32
        %s173 = sadd.s32 %s171, %s172
        %s174 = smul.addr %s173, 8
        %s175 = scalar_lea.vmem %s0, %s174
        %p176 = pneg %p52
        %p177 = pneg %p49
        %p178 = pneg %p73
        %p179 = pneg %p70
        %p180 = pneg %p94
        %p181 = pneg %p91
        %p182 = pneg %p122
        %p183 = pneg %p119
        %s184 = sand.u32 %s109, 1
        %s185 = scalar_lea.sflag [#allocation3], %s184
        %s186 = sand.u32 %s109, 1
        %s187 = smul.addr %s186, 32
        %s188 = scalar_lea.vmem [#allocation2], %s187
        %s189 = smul.u32 16, %s22
        %p190 = scmp.lt.s32.totalorder %s21, 1
        %s191 = scalar_select %p190, %s21, 1
        %p192 = scmp.lt.s32.totalorder %s189, 31
        %s193 = scalar_select %p192, %s189, 31
        %s194 = smul.addr %s191, 32
        %s195 = sadd.s32 %s193, %s194
        %s196 = smul.addr %s195, 8
        %s197 = scalar_lea.vmem %s0, %s196
        %s198 = smul.u32 16, %s22
        %s199 = smul.u32 4, %s22
        %v200 = vld [vmem:[%s197] sm:$0xff]
        %v201 = vld [vmem:[%s197 + $0x8] sm:$0xff]
        %v202 = vld [vmem:[%s197 + $0x10] sm:$0xff]
        %v203 = vld [vmem:[%s197 + $0x18] sm:$0xff]
        %v204 = vld [vmem:[%s197 + $0x20] sm:$0xff]
        %v205 = vld [vmem:[%s197 + $0x28] sm:$0xff]
        %v206 = vld [vmem:[%s197 + $0x30] sm:$0xff]
        %v207 = vld [vmem:[%s197 + $0x38] sm:$0xff]
        %v208 = vld [vmem:[%s197 + $0x40] sm:$0xff]
        %v209 = vld [vmem:[%s197 + $0x48] sm:$0xff]
        %v210 = vld [vmem:[%s197 + $0x50] sm:$0xff]
        %v211 = vld [vmem:[%s197 + $0x58] sm:$0xff]
        %v212 = vld [vmem:[%s197 + $0x60] sm:$0xff]
        %v213 = vld [vmem:[%s197 + $0x68] sm:$0xff]
        %v214 = vld [vmem:[%s197 + $0x70] sm:$0xff]
        %v215 = vld [vmem:[%s197 + $0x78] sm:$0xff]
        %216 = vxpose.xlu0.b32.start [1/16] %v200, 128
        %217 = vxpose.xlu0.b32.cont [2/16] %v201, 128
        %218 = vxpose.xlu0.b32.cont [3/16] %v202, 128
        %219 = vxpose.xlu0.b32.cont [4/16] %v203, 128
        %220 = vxpose.xlu0.b32.cont [5/16] %v204, 128
        %221 = vxpose.xlu0.b32.cont [6/16] %v205, 128
        %222 = vxpose.xlu0.b32.cont [7/16] %v206, 128
        %223 = vxpose.xlu0.b32.cont [8/16] %v207, 128
        %224 = vxpose.xlu0.b32.cont [9/16] %v208, 128
        %225 = vxpose.xlu0.b32.cont [10/16] %v209, 128
        %226 = vxpose.xlu0.b32.cont [11/16] %v210, 128
        %227 = vxpose.xlu0.b32.cont [12/16] %v211, 128
        %228 = vxpose.xlu0.b32.cont [13/16] %v212, 128
        %229 = vxpose.xlu0.b32.cont [14/16] %v213, 128
        %230 = vxpose.xlu0.b32.cont [15/16] %v214, 128
        %231 = vxpose.xlu0.b32.end [16/16] %v215, 128
        %v232 = vpop.trf.xlu0
        %v233 = vpop.trf.xlu0
        %v234 = vpop.trf.xlu0
        %v235 = vpop.trf.xlu0
        %v236 = vpop.trf.xlu0
        %v237 = vpop.trf.xlu0
        %v238 = vpop.trf.xlu0
        %v239 = vpop.trf.xlu0
        %v240 = vpop.trf.xlu0
        %v241 = vpop.trf.xlu0
        %v242 = vpop.trf.xlu0
        %v243 = vpop.trf.xlu0
        %v244 = vpop.trf.xlu0
        %v245 = vpop.trf.xlu0
        %v246 = vpop.trf.xlu0
        %v247 = vpop.trf.xlu0
        %v248 = vld [vmem:[%s1] sm:$0xff]
        %v249 = vld [vmem:[%s1 + $0x8] sm:$0xff]
        %v250 = vld [vmem:[%s1 + $0x10] sm:$0xff]
        %v251 = vld [vmem:[%s1 + $0x18] sm:$0xff]
        %v252 = vld [vmem:[%s1 + $0x20] sm:$0xff]
        %v253 = vld [vmem:[%s1 + $0x28] sm:$0xff]
        %v254 = vld [vmem:[%s1 + $0x30] sm:$0xff]
        %v255 = vld [vmem:[%s1 + $0x38] sm:$0xff]
        %v256 = vld [vmem:[%s1 + $0x40] sm:$0xff]
        %v257 = vld [vmem:[%s1 + $0x48] sm:$0xff]
        %v258 = vld [vmem:[%s1 + $0x50] sm:$0xff]
        %v259 = vld [vmem:[%s1 + $0x58] sm:$0xff]
        %v260 = vld [vmem:[%s1 + $0x60] sm:$0xff]
        %v261 = vld [vmem:[%s1 + $0x68] sm:$0xff]
        %v262 = vld [vmem:[%s1 + $0x70] sm:$0xff]
        %v263 = vld [vmem:[%s1 + $0x78] sm:$0xff]
        %v264 = vld [vmem:[%s1 + $0x80] sm:$0xff]
        %v265 = vld [vmem:[%s1 + $0x88] sm:$0xff]
        %v266 = vld [vmem:[%s1 + $0x90] sm:$0xff]
        %v267 = vld [vmem:[%s1 + $0x98] sm:$0xff]
        %v268 = vld [vmem:[%s1 + $0xa0] sm:$0xff]
        %v269 = vld [vmem:[%s1 + $0xa8] sm:$0xff]
        %v270 = vld [vmem:[%s1 + $0xb0] sm:$0xff]
        %v271 = vld [vmem:[%s1 + $0xb8] sm:$0xff]
        %v272 = vld [vmem:[%s1 + $0xc0] sm:$0xff]
        %v273 = vld [vmem:[%s1 + $0xc8] sm:$0xff]
        %v274 = vld [vmem:[%s1 + $0xd0] sm:$0xff]
        %v275 = vld [vmem:[%s1 + $0xd8] sm:$0xff]
        %v276 = vld [vmem:[%s1 + $0xe0] sm:$0xff]
        %v277 = vld [vmem:[%s1 + $0xe8] sm:$0xff]
        %v278 = vld [vmem:[%s1 + $0xf0] sm:$0xff]
        %v279 = vld [vmem:[%s1 + $0xf8] sm:$0xff]
        %v280 = vld [vmem:[%s1 + $0x100] sm:$0xff]
        %v281 = vld [vmem:[%s1 + $0x108] sm:$0xff]
        %v282 = vld [vmem:[%s1 + $0x110] sm:$0xff]
        %v283 = vld [vmem:[%s1 + $0x118] sm:$0xff]
        %v284 = vld [vmem:[%s1 + $0x120] sm:$0xff]
        %v285 = vld [vmem:[%s1 + $0x128] sm:$0xff]
        %v286 = vld [vmem:[%s1 + $0x130] sm:$0xff]
        %v287 = vld [vmem:[%s1 + $0x138] sm:$0xff]
        %v288 = vld [vmem:[%s1 + $0x140] sm:$0xff]
        %v289 = vld [vmem:[%s1 + $0x148] sm:$0xff]
        %v290 = vld [vmem:[%s1 + $0x150] sm:$0xff]
        %v291 = vld [vmem:[%s1 + $0x158] sm:$0xff]
        %v292 = vld [vmem:[%s1 + $0x160] sm:$0xff]
        %v293 = vld [vmem:[%s1 + $0x168] sm:$0xff]
        %v294 = vld [vmem:[%s1 + $0x170] sm:$0xff]
        %v295 = vld [vmem:[%s1 + $0x178] sm:$0xff]
        %v296 = vld [vmem:[%s1 + $0x180] sm:$0xff]
        %v297 = vld [vmem:[%s1 + $0x188] sm:$0xff]
        %v298 = vld [vmem:[%s1 + $0x190] sm:$0xff]
        %v299 = vld [vmem:[%s1 + $0x198] sm:$0xff]
        %v300 = vld [vmem:[%s1 + $0x1a0] sm:$0xff]
        %v301 = vld [vmem:[%s1 + $0x1a8] sm:$0xff]
        %v302 = vld [vmem:[%s1 + $0x1b0] sm:$0xff]
        %v303 = vld [vmem:[%s1 + $0x1b8] sm:$0xff]
        %v304 = vld [vmem:[%s1 + $0x1c0] sm:$0xff]
        %v305 = vld [vmem:[%s1 + $0x1c8] sm:$0xff]
        %v306 = vld [vmem:[%s1 + $0x1d0] sm:$0xff]
        %v307 = vld [vmem:[%s1 + $0x1d8] sm:$0xff]
        %v308 = vld [vmem:[%s1 + $0x1e0] sm:$0xff]
        %v309 = vld [vmem:[%s1 + $0x1e8] sm:$0xff]
        %v310 = vld [vmem:[%s1 + $0x1f0] sm:$0xff]
        %v311 = vld [vmem:[%s1 + $0x1f8] sm:$0xff]
        %v312 = vld [vmem:[%s2] sm:$0xf]
        %v314 = vlaneseq
        %v315 = vshrl.u32 %v314, 7
        %v316 = vsub.s32 0, %v315
        %v317 = vrot.slane %v312, %v316
        %v318 = vlaneseq
        %v319 = vshrl.u32 %v318, 7
        %v320 = vsub.s32 1, %v319
        %v321 = vrot.slane %v312, %v320
        %v322 = vlaneseq
        %v323 = vshrl.u32 %v322, 7
        %v324 = vsub.s32 2, %v323
        %v325 = vrot.slane %v312, %v324
        %v326 = vlaneseq
        %v327 = vshrl.u32 %v326, 7
        %v328 = vsub.s32 3, %v327
        %v329 = vrot.slane %v312, %v328
        %334 = vmatprep.subr.mxu0 %v249
        %335 = vmatpush1.msra.mxu0 %v248
        %336 = vmatprep.subr.mxu0 %v253
        %337 = vmatpush1.msra.mxu0 %v252
        %338 = vmatprep.subr.mxu0 %v257
        %339 = vmatpush1.msra.mxu0 %v256
        %340 = vmatprep.subr.mxu0 %v261
        %341 = vmatpush1.msra.mxu0 %v260
        %342 = vmatprep.subr.mxu0 %v265
        %343 = vmatpush1.msra.mxu0 %v264
        %344 = vmatprep.subr.mxu0 %v269
        %345 = vmatpush1.msra.mxu0 %v268
        %346 = vmatprep.subr.mxu0 %v273
        %347 = vmatpush1.msra.mxu0 %v272
        %348 = vmatprep.subr.mxu0 %v277
        %349 = vmatpush1.msra.mxu0 %v276
        %350 = vmatprep.subr.mxu0 %v281
        %351 = vmatpush1.msra.mxu0 %v280
        %352 = vmatprep.subr.mxu0 %v285
        %353 = vmatpush1.msra.mxu0 %v284
        %354 = vmatprep.subr.mxu0 %v289
        %355 = vmatpush1.msra.mxu0 %v288
        %356 = vmatprep.subr.mxu0 %v293
        %357 = vmatpush1.msra.mxu0 %v292
        %358 = vmatprep.subr.mxu0 %v297
        %359 = vmatpush1.msra.mxu0 %v296
        %360 = vmatprep.subr.mxu0 %v301
        %361 = vmatpush1.msra.mxu0 %v300
        %362 = vmatprep.subr.mxu0 %v305
        %363 = vmatpush1.msra.mxu0 %v304
        %364 = vmatprep.subr.mxu0 %v309
        %365 = vmatpush1.msra.mxu0 %v308
        %366 = vmatprep.subr.mxu0 0.0
        %367 = vmatpush1.msra.mxu0 0.0
        %368 = vmatprep.subr.mxu0 0.0
        %369 = vmatpush1.msra.mxu0 0.0
        %370 = vmatprep.subr.mxu0 0.0
        %371 = vmatpush1.msra.mxu0 0.0
        %372 = vmatprep.subr.mxu0 0.0
        %373 = vmatpush1.msra.mxu0 0.0
        %374 = vmatprep.subr.mxu0 0.0
        %375 = vmatpush1.msra.mxu0 0.0
        %376 = vmatprep.subr.mxu0 0.0
        %377 = vmatpush1.msra.mxu0 0.0
        %378 = vmatprep.subr.mxu0 0.0
        %379 = vmatpush1.msra.mxu0 0.0
        %380 = vmatprep.subr.mxu0 0.0
        %381 = vmatpush1.msra.mxu0 0.0
        %382 = vmatprep.subr.mxu0 0.0
        %383 = vmatpush1.msra.mxu0 0.0
        %384 = vmatprep.subr.mxu0 0.0
        %385 = vmatpush1.msra.mxu0 0.0
        %386 = vmatprep.subr.mxu0 0.0
        %387 = vmatpush1.msra.mxu0 0.0
        %388 = vmatprep.subr.mxu0 0.0
        %389 = vmatpush1.msra.mxu0 0.0
        %390 = vmatprep.subr.mxu0 0.0
        %391 = vmatpush1.msra.mxu0 0.0
        %392 = vmatprep.subr.mxu0 0.0
        %393 = vmatpush1.msra.mxu0 0.0
        %394 = vmatprep.subr.mxu0 0.0
        %395 = vmatpush1.msra.mxu0 0.0
        %396 = vmatprep.subr.mxu0 0.0
        %397 = vmatpush1.msra.mxu0 0.0
        %398 = vmatprep.mubr.f32.mxu0 0.0
        %399 = vmatmul.mubr.f32.gmra.mrb[0].mxu0 %v232
        %v400 = vpop.f32.mrb[0].mxu0
        %v401 = vadd.f32 %v317, %v400
        %v402 = vpop.f32.mrb[0].mxu0
        %v403 = vadd.f32 %v321, %v402
        %404 = vdwg.mxu0
        %405 = vmatprep.subr.mxu0 %v251
        %406 = vmatpush1.msra.mxu0 %v250
        %407 = vmatprep.subr.mxu0 %v255
        %408 = vmatpush1.msra.mxu0 %v254
        %409 = vmatprep.subr.mxu0 %v259
        %410 = vmatpush1.msra.mxu0 %v258
        %411 = vmatprep.subr.mxu0 %v263
        %412 = vmatpush1.msra.mxu0 %v262
        %413 = vmatprep.subr.mxu0 %v267
        %414 = vmatpush1.msra.mxu0 %v266
        %415 = vmatprep.subr.mxu0 %v271
        %416 = vmatpush1.msra.mxu0 %v270
        %417 = vmatprep.subr.mxu0 %v275
        %418 = vmatpush1.msra.mxu0 %v274
        %419 = vmatprep.subr.mxu0 %v279
        %420 = vmatpush1.msra.mxu0 %v278
        %421 = vmatprep.subr.mxu0 %v283
        %422 = vmatpush1.msra.mxu0 %v282
        %423 = vmatprep.subr.mxu0 %v287
        %424 = vmatpush1.msra.mxu0 %v286
        %425 = vmatprep.subr.mxu0 %v291
        %426 = vmatpush1.msra.mxu0 %v290
        %427 = vmatprep.subr.mxu0 %v295
        %428 = vmatpush1.msra.mxu0 %v294
        %429 = vmatprep.subr.mxu0 %v299
        %430 = vmatpush1.msra.mxu0 %v298
        %431 = vmatprep.subr.mxu0 %v303
        %432 = vmatpush1.msra.mxu0 %v302
        %433 = vmatprep.subr.mxu0 %v307
        %434 = vmatpush1.msra.mxu0 %v306
        %435 = vmatprep.subr.mxu0 %v311
        %436 = vmatpush1.msra.mxu0 %v310
        %437 = vmatprep.subr.mxu0 0.0
        %438 = vmatpush1.msra.mxu0 0.0
        %439 = vmatprep.subr.mxu0 0.0
        %440 = vmatpush1.msra.mxu0 0.0
        %441 = vmatprep.subr.mxu0 0.0
        %442 = vmatpush1.msra.mxu0 0.0
        %443 = vmatprep.subr.mxu0 0.0
        %444 = vmatpush1.msra.mxu0 0.0
        %445 = vmatprep.subr.mxu0 0.0
        %446 = vmatpush1.msra.mxu0 0.0
        %447 = vmatprep.subr.mxu0 0.0
        %448 = vmatpush1.msra.mxu0 0.0
        %449 = vmatprep.subr.mxu0 0.0
        %450 = vmatpush1.msra.mxu0 0.0
        %451 = vmatprep.subr.mxu0 0.0
        %452 = vmatpush1.msra.mxu0 0.0
        %453 = vmatprep.subr.mxu0 0.0
        %454 = vmatpush1.msra.mxu0 0.0
        %455 = vmatprep.subr.mxu0 0.0
        %456 = vmatpush1.msra.mxu0 0.0
        %457 = vmatprep.subr.mxu0 0.0
        %458 = vmatpush1.msra.mxu0 0.0
        %459 = vmatprep.subr.mxu0 0.0
        %460 = vmatpush1.msra.mxu0 0.0
        %461 = vmatprep.subr.mxu0 0.0
        %462 = vmatpush1.msra.mxu0 0.0
        %463 = vmatprep.subr.mxu0 0.0
        %464 = vmatpush1.msra.mxu0 0.0
        %465 = vmatprep.subr.mxu0 0.0
        %466 = vmatpush1.msra.mxu0 0.0
        %467 = vmatprep.subr.mxu0 0.0
        %468 = vmatpush1.msra.mxu0 0.0
        %469 = vmatprep.mubr.f32.mxu0 0.0
        %470 = vmatmul.mubr.f32.gmra.mrb[0].mxu0 %v232
        %v471 = vpop.f32.mrb[0].mxu0
        %v472 = vadd.f32 %v325, %v471
        %v473 = vpop.f32.mrb[0].mxu0
        %v474 = vadd.f32 %v329, %v473
        %475 = vdwg.mxu0
        %476 = vst [vmem:[%s188] sm:$0xff] %v401
        %477 = vst [vmem:[%s188 + $0x8] sm:$0xff] %v403
        %478 = vst [vmem:[%s188 + $0x10] sm:$0xff] %v472
        %479 = vst [vmem:[%s188 + $0x18] sm:$0xff] %v474
        %s480 = sand.u32 %s109, 1
        %s481 = scalar_lea.sflag [#allocation3], %s480
        %s482 = sand.u32 %s109, 1
        %s483 = smul.addr %s482, 32
        %s484 = scalar_lea.vmem [#allocation2], %s483
        // Predicated region
        $region33: #{tpu_custom_call.1} parent=31 // pred_check
          %p485 = pneg %p119
        $region34: #{tpu_custom_call.1} parent=31 // pred_check_branch
          %487 = sbr.rel (%p485) target = $region36
        $region35: #{tpu_custom_call.1} parent=31 // pred_region
          %s488 = smul.u32 4, %s22
          %s490 = ssub.s32 512, 512
          %491 = vsyncadd %s481, %s490
          %s492 = smul.addr %s21, 8
          %s493 = sadd.s32 %s488, %s492
          %s494 = smul.addr %s493, 128
          %s495 = scalar_lea.hbm %s3, %s494
          %s497 = sshll.u32 %s484, 4
          %s498 = int_to_ptr.vmem [resolvable:$true] %s497
          %500 = dma.vmem_to_hbm [thread:$0]  %s498, 512, %s495, %s481
        $region36: #{tpu_custom_call.1} parent=31 // pred_fallthru
          _
      $region32: #{tpu_custom_call.1} parent=5 // pred_fallthru
        _
      %p501 = scmp.le.s32.totalorder 2, %s12
      // Predicated region
      $region37: #{tpu_custom_call.1} parent=5 // pred_check
        %p502 = pneg %p501
      $region38: #{tpu_custom_call.1} parent=5 // pred_check_branch
        %504 = sbr.rel (%p502) target = $region40
      $region39: #{tpu_custom_call.1} parent=5 // pred_region
        %s505 = ssub.s32 %s12, 2
        // Predicated region
        $region41: #{tpu_custom_call.1} parent=39 // pred_check
          %p506 = pneg %p125
        $region42: #{tpu_custom_call.1} parent=39 // pred_check_branch
          %508 = sbr.rel (%p506) target = $region44
        $region43: #{tpu_custom_call.1} parent=39 // pred_region
          %s509 = sand.u32 %s110, 1
          %s510 = scalar_lea.sflag [#allocation3], %s509
          %s511 = sand.u32 %s110, 1
          %s512 = smul.addr %s511, 32
          %s513 = scalar_lea.vmem [#allocation2], %s512
          %514 = dma.done %s510, 512
        $region44: #{tpu_custom_call.1} parent=39 // pred_fallthru
          _
      $region40: #{tpu_custom_call.1} parent=5 // pred_fallthru
        _
    $region6: #{tpu_custom_call.1} parent=1 // loop_footer
      %s16 = sadd.s32 1, %s12
    $region7: #{tpu_custom_call.1} parent=1 // loop_footer_branch
      %11 = sbr.rel target = $region3
    $region8: #{tpu_custom_call.1} parent=1 // loop_exit
      _
    %515 = vsyncpa [#allocation3], 1
    %s516 = scalar_lea.sflag [#allocation3], 1
    %517 = vsyncpa %s516, 1

</llo_original>
